<compile_context>
chip_gen: v5e
topology: v5e:2x2
jax: 0.10.0
libtpu: 0.0.40
codegen_flags: <defaults>
</compile_context>

<pallas_src>
import functools

import jax
import jax.numpy as jnp
from jax import lax
from jax.experimental import pallas as pl
from jax.experimental.pallas import tpu as pltpu


def _block_kernel(x_ref, m_ref, cmask_ref, w_ref, params_ref, gproj_ref,
                  o_ref, stacked_ref, *, W, eps, cpg, compute_dtype):
    """One batch sample per grid step.

    x_ref      : (1, Cin, N)     raw sample, N = H*W row-major flat spatial axis
    m_ref      : (1, 1, N)       time mask broadcast over H (f32)
    cmask_ref  : (2, N)          column-validity masks: row0 zeroes w==W-1
                                 (source for dw=-1 taps), row1 zeroes w==0
                                 (source for dw=+1 taps)
    w_ref      : (Cout, 9*Cin)   conv weight, K ordered tap-major then channel
    params_ref : (Cout, 3)       [conv bias | gamma | beta]
    gproj_ref  : (Cout, Cout)    block-diagonal ones (group-sum projection)
    o_ref      : (1, Cout, N)    cropped output (already NCHW-flat)
    stacked_ref: (9*Cin, N)      scratch: stacked shifted tap windows
    """
    N = x_ref.shape[2]
    Cin = x_ref.shape[1]

    # --- masked input: f32 elementwise (v5e-friendly), cast once for the MXU ---
    m = m_ref[0]                                               # (1, N) f32
    xmf = x_ref[0].astype(jnp.float32) * m                     # (Cin, N) f32
    xm_c = xmf.astype(compute_dtype)                           # dw == 0 taps
    xm_l = (xmf * cmask_ref[0:1, :]).astype(compute_dtype)     # dw == -1 taps
    xm_r = (xmf * cmask_ref[1:2, :]).astype(compute_dtype)     # dw == +1 taps
    srcs = {-1: xm_l, 0: xm_c, 1: xm_r}

    # --- stack the 9 shifted tap windows into one (9*Cin, N) MXU operand ------
    # window_k[:, q] = input(h+dh, w+dw) if inside the HxW grid else 0,
    # with q = h*W + w and delta = dh*W + dw.  Column wrap handled by the
    # pre-zeroed sources; row out-of-range handled by static zero strips.
    for k in range(9):
        dh, dw = k // 3 - 1, k % 3 - 1
        delta = dh * W + dw
        lo = max(0, -delta)               # first q whose read q+delta is >= 0
        hi = N - max(0, delta)            # one past the last with q+delta < N
        row = k * Cin
        stacked_ref[row:row + Cin, lo:hi] = srcs[dw][:, lo + delta:hi + delta]
        if lo > 0:
            stacked_ref[row:row + Cin, 0:lo] = jnp.zeros((Cin, lo), compute_dtype)
        if hi < N:
            stacked_ref[row:row + Cin, hi:N] = jnp.zeros((Cin, N - hi), compute_dtype)

    # --- single fused conv matmul: (Cout, 9*Cin) @ (9*Cin, N), f32 accumulate --
    acc = jnp.dot(w_ref[...], stacked_ref[...],
                  preferred_element_type=jnp.float32)          # (Cout, N), no bias

    # --- GroupNorm: one-pass stats; conv bias folded into per-channel scalars --
    bias = params_ref[:, 0:1]                                  # (Cout, 1)
    gamma = params_ref[:, 1:2]
    beta = params_ref[:, 2:3]

    nf = float(N)
    s1 = jnp.sum(acc, axis=1, keepdims=True)                   # (Cout, 1)
    s2 = jnp.sum(acc * acc, axis=1, keepdims=True)             # (Cout, 1)
    s1b = s1 + nf * bias                                       # stats of (acc + bias)
    s2b = s2 + 2.0 * bias * s1 + nf * bias * bias

    if cpg == 1:                                               # per-channel norm
        g1, g2 = s1b, s2b
    else:                                                      # group sums via MXU
        g1 = jnp.dot(gproj_ref[...], s1b, preferred_element_type=jnp.float32)
        g2 = jnp.dot(gproj_ref[...], s2b, preferred_element_type=jnp.float32)

    inv_cnt = 1.0 / (nf * cpg)
    mean = g1 * inv_cnt
    var = jnp.maximum(g2 * inv_cnt - mean * mean, 0.0)         # one-pass, clamped
    rstd = lax.rsqrt(var + eps)
    scale = gamma * rstd                                       # (Cout, 1)
    shift = (bias - mean) * scale + beta                       # bias folded here

    y = acc * scale + shift                                    # (Cout, N), f32

    # --- Mish via a single exp: tanh(softplus(y)) = t(t+2)/(t(t+2)+2), t=e^y --
    t = jnp.exp(jnp.minimum(y, 25.0))                          # mish(y) -> y for large y
    u = t * (t + 2.0)
    y = y * (u / (u + 2.0))

    # --- final mask multiply, cast once, lane-dense store ----------------------
    o_ref[0, :, :] = (y * m).astype(o_ref.dtype)


def block_forward(x, mask, conv_w, conv_b, gamma, beta, *, groups=8, eps=1e-5,
                  compute_dtype=jnp.bfloat16, out_dtype=jnp.bfloat16):
    """x: (B, Cin, H, W) NCHW, mask broadcastable to (B, 1, H, W).
    Returns (B, Cout, H, W) in `out_dtype`."""
    B, Cin, H, W = x.shape
    Cout = conv_w.shape[0]
    assert Cout % groups == 0
    cpg = Cout // groups
    N = H * W

    # ---- layout-only glue (no padding / cropping passes) ----------------------
    x_flat = x.reshape(B, Cin, N)                                       # free reshape
    m_flat = jnp.broadcast_to(mask, (B, 1, H, W)).reshape(B, 1, N)
    m_flat = m_flat.astype(jnp.float32)                                 # tiny (B*N f32)

    # conv weight: (Cout, Cin, 3, 3) -> (Cout, 9*Cin), K ordered tap-major
    w2 = jnp.transpose(conv_w, (0, 2, 3, 1)).reshape(Cout, 9 * Cin)
    w2 = w2.astype(compute_dtype)

    # per-channel params packed as columns: [bias | gamma | beta]
    params = jnp.stack([conv_b, gamma, beta], axis=1).astype(jnp.float32)

    # group-sum projection (block-diagonal ones), passed lane-aligned
    gmat = jnp.repeat(jnp.eye(groups, dtype=jnp.float32), cpg, axis=0)  # (Cout, G)
    gproj = gmat @ gmat.T                                               # (Cout, Cout)

    # column-validity masks on the flat H*W axis
    wcol = jnp.arange(N, dtype=jnp.int32) % W
    cmask = jnp.stack([(wcol != W - 1).astype(jnp.float32),   # source for dw = -1
                       (wcol != 0).astype(jnp.float32)])      # source for dw = +1

    kernel = functools.partial(_block_kernel, W=W, eps=eps, cpg=cpg,
                               compute_dtype=compute_dtype)

    # ---- scoped-VMEM limit from the real per-step footprint -------------------
    cb = jnp.dtype(compute_dtype).itemsize
    ob = jnp.dtype(out_dtype).itemsize
    fp = (2 * Cin * N * 4 + 2 * N * 4                 # double-buffered x + mask
          + 2 * Cout * N * ob                         # double-buffered output
          + Cout * 9 * Cin * cb                       # resident weights
          + Cout * Cout * 4 + Cout * 3 * 4 + 2 * N * 4  # gproj / params / cmask
          + 9 * Cin * N * cb                          # stacked-window scratch
          + 3 * Cin * N * 4                           # xm / xm_l / xm_r f32 values
          + 4 * Cout * N * 4)                         # f32 acc / epilogue headroom
    try:
        vmem_cap = int(pltpu.get_tpu_info().vmem_capacity_bytes)
    except Exception:
        vmem_cap = 64 << 20                           # conservative (v7x physical)
    vmem_limit = int(min(max(int(fp * 1.3) + (2 << 20), 16 << 20),
                         int(vmem_cap * 0.85)))

    out_flat = pl.pallas_call(
        kernel,
        out_shape=jax.ShapeDtypeStruct((B, Cout, N), out_dtype),
        grid_spec=pltpu.PrefetchScalarGridSpec(
            num_scalar_prefetch=0,
            grid=(B,),
            in_specs=[
                pl.BlockSpec((1, Cin, N), lambda b: (b, 0, 0)),     # raw sample
                pl.BlockSpec((1, 1, N), lambda b: (b, 0, 0)),       # time mask
                pl.BlockSpec((2, N), lambda b: (0, 0)),             # column masks
                pl.BlockSpec((Cout, 9 * Cin), lambda b: (0, 0)),    # fused conv weight
                pl.BlockSpec((Cout, 3), lambda b: (0, 0)),          # bias/gamma/beta
                pl.BlockSpec((Cout, Cout), lambda b: (0, 0)),       # group projection
            ],
            out_specs=pl.BlockSpec((1, Cout, N), lambda b: (b, 0, 0)),
            scratch_shapes=[pltpu.VMEM((9 * Cin, N), compute_dtype)],
        ),
        compiler_params=pltpu.CompilerParams(
            dimension_semantics=("parallel",),
            vmem_limit_bytes=vmem_limit),
    )(x_flat, m_flat, cmask, w2, params, gproj)

    # metadata-only reshape back to NCHW (no crop, no extra HBM pass)
    return out_flat.reshape(B, Cout, H, W)


def block_reference(x, mask, conv_w, conv_b, gamma, beta, *, groups=8, eps=1e-5):
    """Pure-JAX reference matching the PyTorch module."""
    xm = x * mask
    y = lax.conv_general_dilated(
        xm, conv_w, window_strides=(1, 1), padding=((1, 1), (1, 1)),
        dimension_numbers=("NCHW", "OIHW", "NCHW"))
    y = y + conv_b[None, :, None, None]
    B, C, H, W = y.shape
    yg = y.reshape(B, groups, C // groups, H, W)
    mu = jnp.mean(yg, axis=(2, 3, 4), keepdims=True)
    var = jnp.mean(jnp.square(yg - mu), axis=(2, 3, 4), keepdims=True)
    yn = ((yg - mu) * lax.rsqrt(var + eps)).reshape(B, C, H, W)
    yn = yn * gamma[None, :, None, None] + beta[None, :, None, None]
    out = yn * jnp.tanh(jax.nn.softplus(yn))
    return out * mask


if __name__ == "__main__":
    B, Cin, Cout, H, W = 2, 4, 16, 16, 16
    groups = 8   # PyTorch default in Block(...); cpg = 2 exercises the group path

    key = jax.random.PRNGKey(0)
    kx, kw, kb, kg, kbeta = jax.random.split(key, 5)

    x = jax.random.normal(kx, (B, Cin, H, W), dtype=jnp.float32)

    # mask: per-sample valid length along the last (time) axis, shape (B,1,1,W)
    lengths = jnp.array([W, 12], dtype=jnp.int32)
    mask = (jnp.arange(W)[None, :] < lengths[:, None]).astype(jnp.float32)
    mask = mask[:, None, None, :]                          # (B, 1, 1, W)

    # deterministic synthetic parameters (same shapes as the PyTorch module)
    conv_w = 0.2 * jax.random.normal(kw, (Cout, Cin, 3, 3), dtype=jnp.float32)
    conv_b = 0.1 * jax.random.normal(kb, (Cout,), dtype=jnp.float32)
    gamma = 1.0 + 0.1 * jax.random.normal(kg, (Cout,), dtype=jnp.float32)
    beta = 0.1 * jax.random.normal(kbeta, (Cout,), dtype=jnp.float32)

    ref = jax.block_until_ready(
        block_reference(x, mask, conv_w, conv_b, gamma, beta,
                        groups=groups, eps=1e-5))

    # f32 compute + f32 output (tight check)
    out_f32 = jax.block_until_ready(
        block_forward(x, mask, conv_w, conv_b, gamma, beta, groups=groups,
                      eps=1e-5, compute_dtype=jnp.float32, out_dtype=jnp.float32))
    assert out_f32.shape == (B, Cout, H, W)
    assert jnp.allclose(out_f32, ref, atol=5e-3, rtol=5e-3), \
        f"f32 max abs err = {float(jnp.max(jnp.abs(out_f32 - ref)))}"

    # default bf16 compute + bf16 output (looser check)
    out_bf16 = jax.block_until_ready(
        block_forward(x, mask, conv_w, conv_b, gamma, beta, groups=groups,
                      eps=1e-5, compute_dtype=jnp.bfloat16, out_dtype=jnp.bfloat16))
    assert out_bf16.shape == (B, Cout, H, W)
    err = jnp.max(jnp.abs(out_bf16.astype(jnp.float32) - ref))
    assert jnp.allclose(out_bf16.astype(jnp.float32), ref, atol=4e-2, rtol=4e-2), \
        f"bf16 max abs err = {float(err)}"

    print("KERNEL_OK")
</pallas_src>

<mosaic_0001>
module attributes {stable_mosaic.version = 11 : i64} {
  func.func @_block_kernel(%arg0: i32, %arg1: memref<1x4x256xf32, #tpu.memory_space<vmem>>, %arg2: memref<1x1x256xf32, #tpu.memory_space<vmem>>, %arg3: memref<2x256xf32, #tpu.memory_space<vmem>>, %arg4: memref<16x36xf32, #tpu.memory_space<vmem>>, %arg5: memref<16x3xf32, #tpu.memory_space<vmem>>, %arg6: memref<16x16xf32, #tpu.memory_space<vmem>>, %arg7: memref<1x16x256xf32, #tpu.memory_space<vmem>>, %arg8: memref<36x256xf32, #tpu.memory_space<vmem>>) attributes {dimension_semantics = [#tpu.dimension_semantics<parallel>], iteration_bounds = array<i64: 2>, scalar_prefetch = 0 : i64, scratch_operands = 1 : i64, tpu.core_type = #tpu.core_type<tc>, window_params = [{transform_indices = @transform_0, window_bounds = array<i64: 1, 4, 256>}, {transform_indices = @transform_1, window_bounds = array<i64: 1, 1, 256>}, {pipeline_mode = #tpu.pipeline_mode<synchronous>, transform_indices = @transform_2, window_bounds = array<i64: 2, 256>}, {pipeline_mode = #tpu.pipeline_mode<synchronous>, transform_indices = @transform_3, window_bounds = array<i64: 16, 36>}, {pipeline_mode = #tpu.pipeline_mode<synchronous>, transform_indices = @transform_4, window_bounds = array<i64: 16, 3>}, {pipeline_mode = #tpu.pipeline_mode<synchronous>, transform_indices = @transform_5, window_bounds = array<i64: 16, 16>}, {transform_indices = @transform_6, window_bounds = array<i64: 1, 16, 256>}]} {
    %c0 = arith.constant 0 : index
    %c0_0 = arith.constant 0 : index
    %c0_1 = arith.constant 0 : index
    %0 = vector.load %arg2[%c0, %c0_0, %c0_1] : memref<1x1x256xf32, #tpu.memory_space<vmem>>, vector<1x1x256xf32>
    %1 = vector.shape_cast %0 : vector<1x1x256xf32> to vector<1x256xf32>
    %c0_2 = arith.constant 0 : index
    %c0_3 = arith.constant 0 : index
    %c0_4 = arith.constant 0 : index
    %2 = vector.load %arg1[%c0_2, %c0_3, %c0_4] : memref<1x4x256xf32, #tpu.memory_space<vmem>>, vector<1x4x256xf32>
    %3 = vector.shape_cast %2 : vector<1x4x256xf32> to vector<4x256xf32>
    %4 = vector.broadcast %1 : vector<1x256xf32> to vector<4x256xf32>
    %5 = arith.mulf %3, %4 : vector<4x256xf32>
    %c0_5 = arith.constant 0 : index
    %c0_6 = arith.constant 0 : index
    %6 = vector.load %arg3[%c0_5, %c0_6] : memref<2x256xf32, #tpu.memory_space<vmem>>, vector<1x256xf32>
    %7 = vector.broadcast %6 : vector<1x256xf32> to vector<4x256xf32>
    %8 = arith.mulf %5, %7 : vector<4x256xf32>
    %c1 = arith.constant 1 : index
    %c0_7 = arith.constant 0 : index
    %9 = vector.load %arg3[%c1, %c0_7] : memref<2x256xf32, #tpu.memory_space<vmem>>, vector<1x256xf32>
    %10 = vector.broadcast %9 : vector<1x256xf32> to vector<4x256xf32>
    %11 = arith.mulf %5, %10 : vector<4x256xf32>
    %12 = vector.extract_strided_slice %8 {offsets = [0, 0], sizes = [4, 239], strides = [1, 1]} : vector<4x256xf32> to vector<4x239xf32>
    %c0_8 = arith.constant 0 : index
    %c17 = arith.constant 17 : index
    %13 = vector.load %arg8[%c0_8, %c17] : memref<36x256xf32, #tpu.memory_space<vmem>>, vector<4x239xf32>
    tpu.vector_store %arg8[%c0_8, %c17], %12 {strides = array<i32>} : memref<36x256xf32, #tpu.memory_space<vmem>>, vector<4x239xf32>,
    %cst = arith.constant 0.000000e+00 : f32
    %14 = vector.broadcast %cst : f32 to vector<4x17xf32>
    %c0_9 = arith.constant 0 : index
    %c0_10 = arith.constant 0 : index
    %15 = vector.load %arg8[%c0_9, %c0_10] : memref<36x256xf32, #tpu.memory_space<vmem>>, vector<4x17xf32>
    tpu.vector_store %arg8[%c0_9, %c0_10], %14 {strides = array<i32>} : memref<36x256xf32, #tpu.memory_space<vmem>>, vector<4x17xf32>,
    %16 = vector.extract_strided_slice %5 {offsets = [0, 0], sizes = [4, 240], strides = [1, 1]} : vector<4x256xf32> to vector<4x240xf32>
    %c4 = arith.constant 4 : index
    %c16 = arith.constant 16 : index
    %17 = vector.load %arg8[%c4, %c16] : memref<36x256xf32, #tpu.memory_space<vmem>>, vector<4x240xf32>
    tpu.vector_store %arg8[%c4, %c16], %16 {strides = array<i32>} : memref<36x256xf32, #tpu.memory_space<vmem>>, vector<4x240xf32>,
    %cst_11 = arith.constant 0.000000e+00 : f32
    %18 = vector.broadcast %cst_11 : f32 to vector<4x16xf32>
    %c4_12 = arith.constant 4 : index
    %c0_13 = arith.constant 0 : index
    %19 = vector.load %arg8[%c4_12, %c0_13] : memref<36x256xf32, #tpu.memory_space<vmem>>, vector<4x16xf32>
    tpu.vector_store %arg8[%c4_12, %c0_13], %18 {strides = array<i32>} : memref<36x256xf32, #tpu.memory_space<vmem>>, vector<4x16xf32>,
    %20 = vector.extract_strided_slice %11 {offsets = [0, 0], sizes = [4, 241], strides = [1, 1]} : vector<4x256xf32> to vector<4x241xf32>
    %c8 = arith.constant 8 : index
    %c15 = arith.constant 15 : index
    %21 = vector.load %arg8[%c8, %c15] : memref<36x256xf32, #tpu.memory_space<vmem>>, vector<4x241xf32>
    tpu.vector_store %arg8[%c8, %c15], %20 {strides = array<i32>} : memref<36x256xf32, #tpu.memory_space<vmem>>, vector<4x241xf32>,
    %cst_14 = arith.constant 0.000000e+00 : f32
    %22 = vector.broadcast %cst_14 : f32 to vector<4x15xf32>
    %c8_15 = arith.constant 8 : index
    %c0_16 = arith.constant 0 : index
    %23 = vector.load %arg8[%c8_15, %c0_16] : memref<36x256xf32, #tpu.memory_space<vmem>>, vector<4x15xf32>
    tpu.vector_store %arg8[%c8_15, %c0_16], %22 {strides = array<i32>} : memref<36x256xf32, #tpu.memory_space<vmem>>, vector<4x15xf32>,
    %24 = vector.extract_strided_slice %8 {offsets = [0, 0], sizes = [4, 255], strides = [1, 1]} : vector<4x256xf32> to vector<4x255xf32>
    %c12 = arith.constant 12 : index
    %c1_17 = arith.constant 1 : index
    %25 = vector.load %arg8[%c12, %c1_17] : memref<36x256xf32, #tpu.memory_space<vmem>>, vector<4x255xf32>
    tpu.vector_store %arg8[%c12, %c1_17], %24 {strides = array<i32>} : memref<36x256xf32, #tpu.memory_space<vmem>>, vector<4x255xf32>,
    %cst_18 = arith.constant 0.000000e+00 : f32
    %26 = vector.broadcast %cst_18 : f32 to vector<4x1xf32>
    %c12_19 = arith.constant 12 : index
    %c0_20 = arith.constant 0 : index
    %27 = vector.load %arg8[%c12_19, %c0_20] : memref<36x256xf32, #tpu.memory_space<vmem>>, vector<4x1xf32>
    tpu.vector_store %arg8[%c12_19, %c0_20], %26 {strides = array<i32>} : memref<36x256xf32, #tpu.memory_space<vmem>>, vector<4x1xf32>,
    %c16_21 = arith.constant 16 : index
    %c0_22 = arith.constant 0 : index
    %28 = vector.load %arg8[%c16_21, %c0_22] : memref<36x256xf32, #tpu.memory_space<vmem>>, vector<4x256xf32>
    tpu.vector_store %arg8[%c16_21, %c0_22], %5 {strides = array<i32>} : memref<36x256xf32, #tpu.memory_space<vmem>>, vector<4x256xf32>,
    %29 = vector.extract_strided_slice %11 {offsets = [0, 1], sizes = [4, 255], strides = [1, 1]} : vector<4x256xf32> to vector<4x255xf32>
    %c20 = arith.constant 20 : index
    %c0_23 = arith.constant 0 : index
    %30 = vector.load %arg8[%c20, %c0_23] : memref<36x256xf32, #tpu.memory_space<vmem>>, vector<4x255xf32>
    tpu.vector_store %arg8[%c20, %c0_23], %29 {strides = array<i32>} : memref<36x256xf32, #tpu.memory_space<vmem>>, vector<4x255xf32>,
    %cst_24 = arith.constant 0.000000e+00 : f32
    %31 = vector.broadcast %cst_24 : f32 to vector<4x1xf32>
    %c20_25 = arith.constant 20 : index
    %c255 = arith.constant 255 : index
    %32 = vector.load %arg8[%c20_25, %c255] : memref<36x256xf32, #tpu.memory_space<vmem>>, vector<4x1xf32>
    tpu.vector_store %arg8[%c20_25, %c255], %31 {strides = array<i32>} : memref<36x256xf32, #tpu.memory_space<vmem>>, vector<4x1xf32>,
    %33 = vector.extract_strided_slice %8 {offsets = [0, 15], sizes = [4, 241], strides = [1, 1]} : vector<4x256xf32> to vector<4x241xf32>
    %c24 = arith.constant 24 : index
    %c0_26 = arith.constant 0 : index
    %34 = vector.load %arg8[%c24, %c0_26] : memref<36x256xf32, #tpu.memory_space<vmem>>, vector<4x241xf32>
    tpu.vector_store %arg8[%c24, %c0_26], %33 {strides = array<i32>} : memref<36x256xf32, #tpu.memory_space<vmem>>, vector<4x241xf32>,
    %cst_27 = arith.constant 0.000000e+00 : f32
    %35 = vector.broadcast %cst_27 : f32 to vector<4x15xf32>
    %c24_28 = arith.constant 24 : index
    %c241 = arith.constant 241 : index
    %36 = vector.load %arg8[%c24_28, %c241] : memref<36x256xf32, #tpu.memory_space<vmem>>, vector<4x15xf32>
    tpu.vector_store %arg8[%c24_28, %c241], %35 {strides = array<i32>} : memref<36x256xf32, #tpu.memory_space<vmem>>, vector<4x15xf32>,
    %37 = vector.extract_strided_slice %5 {offsets = [0, 16], sizes = [4, 240], strides = [1, 1]} : vector<4x256xf32> to vector<4x240xf32>
    %c28 = arith.constant 28 : index
    %c0_29 = arith.constant 0 : index
    %38 = vector.load %arg8[%c28, %c0_29] : memref<36x256xf32, #tpu.memory_space<vmem>>, vector<4x240xf32>
    tpu.vector_store %arg8[%c28, %c0_29], %37 {strides = array<i32>} : memref<36x256xf32, #tpu.memory_space<vmem>>, vector<4x240xf32>,
    %cst_30 = arith.constant 0.000000e+00 : f32
    %39 = vector.broadcast %cst_30 : f32 to vector<4x16xf32>
    %c28_31 = arith.constant 28 : index
    %c240 = arith.constant 240 : index
    %40 = vector.load %arg8[%c28_31, %c240] : memref<36x256xf32, #tpu.memory_space<vmem>>, vector<4x16xf32>
    tpu.vector_store %arg8[%c28_31, %c240], %39 {strides = array<i32>} : memref<36x256xf32, #tpu.memory_space<vmem>>, vector<4x16xf32>,
    %41 = vector.extract_strided_slice %11 {offsets = [0, 17], sizes = [4, 239], strides = [1, 1]} : vector<4x256xf32> to vector<4x239xf32>
    %c32 = arith.constant 32 : index
    %c0_32 = arith.constant 0 : index
    %42 = vector.load %arg8[%c32, %c0_32] : memref<36x256xf32, #tpu.memory_space<vmem>>, vector<4x239xf32>
    tpu.vector_store %arg8[%c32, %c0_32], %41 {strides = array<i32>} : memref<36x256xf32, #tpu.memory_space<vmem>>, vector<4x239xf32>,
    %cst_33 = arith.constant 0.000000e+00 : f32
    %43 = vector.broadcast %cst_33 : f32 to vector<4x17xf32>
    %c32_34 = arith.constant 32 : index
    %c239 = arith.constant 239 : index
    %44 = vector.load %arg8[%c32_34, %c239] : memref<36x256xf32, #tpu.memory_space<vmem>>, vector<4x17xf32>
    tpu.vector_store %arg8[%c32_34, %c239], %43 {strides = array<i32>} : memref<36x256xf32, #tpu.memory_space<vmem>>, vector<4x17xf32>,
    %c0_35 = arith.constant 0 : index
    %c0_36 = arith.constant 0 : index
    %45 = vector.load %arg4[%c0_35, %c0_36] : memref<16x36xf32, #tpu.memory_space<vmem>>, vector<16x36xf32>
    %c0_37 = arith.constant 0 : index
    %c0_38 = arith.constant 0 : index
    %46 = vector.load %arg8[%c0_37, %c0_38] : memref<36x256xf32, #tpu.memory_space<vmem>>, vector<36x256xf32>
    %cst_39 = arith.constant dense<0.000000e+00> : vector<16x256xf32>
    %47 = tpu.matmul %45, %46, %cst_39 {dimension_numbers = #tpu.dot_dimension_numbers<[1], [0], [0], [1], [0, 0, 1, 1], [], []>} : vector<16x36xf32>, vector<36x256xf32>, vector<16x256xf32> -> vector<16x256xf32>
    %c0_40 = arith.constant 0 : index
    %c0_41 = arith.constant 0 : index
    %48 = vector.load %arg5[%c0_40, %c0_41] : memref<16x3xf32, #tpu.memory_space<vmem>>, vector<16x1xf32>
    %c0_42 = arith.constant 0 : index
    %c1_43 = arith.constant 1 : index
    %49 = vector.load %arg5[%c0_42, %c1_43] : memref<16x3xf32, #tpu.memory_space<vmem>>, vector<16x1xf32>
    %c0_44 = arith.constant 0 : index
    %c2 = arith.constant 2 : index
    %50 = vector.load %arg5[%c0_44, %c2] : memref<16x3xf32, #tpu.memory_space<vmem>>, vector<16x1xf32>
    %cst_45 = arith.constant dense<0.000000e+00> : vector<16xf32>
    %51 = vector.multi_reduction <add>, %47, %cst_45 [1] : vector<16x256xf32> to vector<16xf32>
    %52 = vector.shape_cast %51 : vector<16xf32> to vector<16x1xf32>
    %53 = arith.mulf %47, %47 : vector<16x256xf32>
    %cst_46 = arith.constant dense<0.000000e+00> : vector<16xf32>
    %54 = vector.multi_reduction <add>, %53, %cst_46 [1] : vector<16x256xf32> to vector<16xf32>
    %55 = vector.shape_cast %54 : vector<16xf32> to vector<16x1xf32>
    %cst_47 = arith.constant 2.560000e+02 : f32
    %56 = vector.broadcast %cst_47 : f32 to vector<16x1xf32>
    %57 = arith.mulf %56, %48 : vector<16x1xf32>
    %58 = arith.addf %52, %57 : vector<16x1xf32>
    %cst_48 = arith.constant 2.000000e+00 : f32
    %59 = vector.broadcast %cst_48 : f32 to vector<16x1xf32>
    %60 = arith.mulf %59, %48 : vector<16x1xf32>
    %61 = arith.mulf %60, %52 : vector<16x1xf32>
    %62 = arith.addf %55, %61 : vector<16x1xf32>
    %cst_49 = arith.constant 2.560000e+02 : f32
    %63 = vector.broadcast %cst_49 : f32 to vector<16x1xf32>
    %64 = arith.mulf %63, %48 : vector<16x1xf32>
    %65 = arith.mulf %64, %48 : vector<16x1xf32>
    %66 = arith.addf %62, %65 : vector<16x1xf32>
    %c0_50 = arith.constant 0 : index
    %c0_51 = arith.constant 0 : index
    %67 = vector.load %arg6[%c0_50, %c0_51] : memref<16x16xf32, #tpu.memory_space<vmem>>, vector<16x16xf32>
    %cst_52 = arith.constant dense<0.000000e+00> : vector<16x1xf32>
    %68 = tpu.matmul %67, %58, %cst_52 {dimension_numbers = #tpu.dot_dimension_numbers<[1], [0], [0], [1], [0, 0, 1, 1], [], []>} : vector<16x16xf32>, vector<16x1xf32>, vector<16x1xf32> -> vector<16x1xf32>
    %c0_53 = arith.constant 0 : index
    %c0_54 = arith.constant 0 : index
    %69 = vector.load %arg6[%c0_53, %c0_54] : memref<16x16xf32, #tpu.memory_space<vmem>>, vector<16x16xf32>
    %cst_55 = arith.constant dense<0.000000e+00> : vector<16x1xf32>
    %70 = tpu.matmul %69, %66, %cst_55 {dimension_numbers = #tpu.dot_dimension_numbers<[1], [0], [0], [1], [0, 0, 1, 1], [], []>} : vector<16x16xf32>, vector<16x1xf32>, vector<16x1xf32> -> vector<16x1xf32>
    %cst_56 = arith.constant 0.001953125 : f32
    %71 = vector.broadcast %cst_56 : f32 to vector<16x1xf32>
    %72 = arith.mulf %68, %71 : vector<16x1xf32>
    %cst_57 = arith.constant 0.001953125 : f32
    %73 = vector.broadcast %cst_57 : f32 to vector<16x1xf32>
    %74 = arith.mulf %70, %73 : vector<16x1xf32>
    %75 = arith.mulf %72, %72 : vector<16x1xf32>
    %76 = arith.subf %74, %75 : vector<16x1xf32>
    %cst_58 = arith.constant 0.000000e+00 : f32
    %77 = vector.broadcast %cst_58 : f32 to vector<16x1xf32>
    %78 = arith.maximumf %76, %77 : vector<16x1xf32>
    %cst_59 = arith.constant 9.99999974E-6 : f32
    %79 = vector.broadcast %cst_59 : f32 to vector<16x1xf32>
    %80 = arith.addf %78, %79 : vector<16x1xf32>
    %81 = math.rsqrt %80 : vector<16x1xf32>
    %82 = arith.mulf %49, %81 : vector<16x1xf32>
    %83 = arith.subf %48, %72 : vector<16x1xf32>
    %84 = arith.mulf %83, %82 : vector<16x1xf32>
    %85 = arith.addf %84, %50 : vector<16x1xf32>
    %86 = vector.broadcast %82 : vector<16x1xf32> to vector<16x256xf32>
    %87 = arith.mulf %47, %86 : vector<16x256xf32>
    %88 = vector.broadcast %85 : vector<16x1xf32> to vector<16x256xf32>
    %89 = arith.addf %87, %88 : vector<16x256xf32>
    %cst_60 = arith.constant 2.500000e+01 : f32
    %90 = vector.broadcast %cst_60 : f32 to vector<16x256xf32>
    %91 = arith.minimumf %89, %90 : vector<16x256xf32>
    %92 = math.exp %91 : vector<16x256xf32>
    %cst_61 = arith.constant 2.000000e+00 : f32
    %93 = vector.broadcast %cst_61 : f32 to vector<16x256xf32>
    %94 = arith.addf %92, %93 : vector<16x256xf32>
    %95 = arith.mulf %92, %94 : vector<16x256xf32>
    %cst_62 = arith.constant 2.000000e+00 : f32
    %96 = vector.broadcast %cst_62 : f32 to vector<16x256xf32>
    %97 = arith.addf %95, %96 : vector<16x256xf32>
    %98 = arith.divf %95, %97 : vector<16x256xf32>
    %99 = arith.mulf %89, %98 : vector<16x256xf32>
    %100 = vector.broadcast %1 : vector<1x256xf32> to vector<16x256xf32>
    %101 = arith.mulf %99, %100 : vector<16x256xf32>
    %c0_63 = arith.constant 0 : index
    %c0_64 = arith.constant 0 : index
    %c0_65 = arith.constant 0 : index
    %102 = vector.load %arg7[%c0_63, %c0_64, %c0_65] : memref<1x16x256xf32, #tpu.memory_space<vmem>>, vector<1x16x256xf32>
    %103 = vector.shape_cast %102 : vector<1x16x256xf32> to vector<16x256xf32>
    %104 = vector.shape_cast %101 : vector<16x256xf32> to vector<1x16x256xf32>
    tpu.vector_store %arg7[%c0_63, %c0_64, %c0_65], %104 {strides = array<i32>} : memref<1x16x256xf32, #tpu.memory_space<vmem>>, vector<1x16x256xf32>,
    return
  }
  func.func @transform_0(%arg0: i32) -> (i32, i32, i32) {
    %c0_i32 = arith.constant 0 : i32
    %c0_i32_0 = arith.constant 0 : i32
    %c0_i32_1 = arith.constant 0 : i32
    return %arg0, %c0_i32, %c0_i32_0 : i32, i32, i32
  }
  func.func @transform_1(%arg0: i32) -> (i32, i32, i32) {
    %c0_i32 = arith.constant 0 : i32
    %c0_i32_0 = arith.constant 0 : i32
    %c0_i32_1 = arith.constant 0 : i32
    return %arg0, %c0_i32, %c0_i32_0 : i32, i32, i32
  }
  func.func @transform_2(%arg0: i32) -> (i32, i32) {
    %c0_i32 = arith.constant 0 : i32
    %c0_i32_0 = arith.constant 0 : i32
    %c0_i32_1 = arith.constant 0 : i32
    return %c0_i32, %c0_i32_0 : i32, i32
  }
  func.func @transform_3(%arg0: i32) -> (i32, i32) {
    %c0_i32 = arith.constant 0 : i32
    %c0_i32_0 = arith.constant 0 : i32
    %c0_i32_1 = arith.constant 0 : i32
    return %c0_i32, %c0_i32_0 : i32, i32
  }
  func.func @transform_4(%arg0: i32) -> (i32, i32) {
    %c0_i32 = arith.constant 0 : i32
    %c0_i32_0 = arith.constant 0 : i32
    %c0_i32_1 = arith.constant 0 : i32
    return %c0_i32, %c0_i32_0 : i32, i32
  }
  func.func @transform_5(%arg0: i32) -> (i32, i32) {
    %c0_i32 = arith.constant 0 : i32
    %c0_i32_0 = arith.constant 0 : i32
    %c0_i32_1 = arith.constant 0 : i32
    return %c0_i32, %c0_i32_0 : i32, i32
  }
  func.func @transform_6(%arg0: i32) -> (i32, i32, i32) {
    %c0_i32 = arith.constant 0 : i32
    %c0_i32_0 = arith.constant 0 : i32
    %c0_i32_1 = arith.constant 0 : i32
    return %arg0, %c0_i32, %c0_i32_0 : i32, i32, i32
  }
}

</mosaic_0001>

<llo_original>
// kernel: tpu_custom_call.1
$region0: #{tpu_custom_call.1}
  #allocation0 [shape = 'u32[]', space=smem, size = 0x4, offset = 0x4, fixed_abs, tag = 'smem constant byte address 0x4 - core index']
  #allocation1 [shape = 'u32[72,128]{1,0:T(1,128)}', space=vmem, size = 0x9000, scoped, tag = 'internal scratch']
  #allocation2 [shape = 'f32[36,256]{1,0:T(8,128)}', space=vmem, size = 0xa000, scoped, tag = 'scratch operand']
  %s0 = inlined_call_operand.vmem [shape: f32[2,4,256], index: 0, kind: input, shape index: {}]
  %s1 = inlined_call_operand.vmem [shape: f32[2,1,256], index: 1, kind: input, shape index: {}]
  %s2 = inlined_call_operand.hbm [shape: f32[2,256], index: 2, kind: input, shape index: {}]
  %s3 = inlined_call_operand.hbm [shape: f32[16,36], index: 3, kind: input, shape index: {}]
  %s4 = inlined_call_operand.vmem [shape: f32[16,3], index: 4, kind: input, shape index: {}]
  %s5 = inlined_call_operand.hbm [shape: f32[16,16], index: 5, kind: input, shape index: {}]
  %s6 = inlined_call_operand.hbm [shape: f32[2,16,256], index: 6, kind: output, shape index: {}]
  %s7 = sld [smem:[#allocation0]]
  $region69: #{tpu_custom_call.1} parent=0
    _
  %s9 = ssub.s32 1, %s7
  %s10 = scalar_select 0, %s9, %s7
  $region1: #{tpu_custom_call.1} parent=0
    #allocation3 [shape = 'u8[2048]{0}', space=vmem, size = 0x800, scoped, tag = 'input window, operand 2, single buffered']
    #allocation4 [shape = 's32[2]{0}', space=sflag, size = 0x8, scoped, tag = 'scoped memory for tpu_custom_call.1']
    #allocation5 [shape = 's32[2]{0}', space=sflag, size = 0x8, scoped, tag = 'scoped memory for tpu_custom_call.1']
    #allocation6 [shape = 'u8[8192]{0}', space=vmem, size = 0x2000, scoped, tag = 'input window, operand 3, single buffered']
    #allocation7 [shape = 's32[1]{0}', space=sflag, size = 0x4, scoped, tag = 'scoped memory for tpu_custom_call.1']
    #allocation8 [shape = 'u8[8192]{0}', space=vmem, size = 0x2000, scoped, tag = 'input window, operand 5, single buffered']
    #allocation9 [shape = 'u8[32768]{0}', space=vmem, size = 0x8000, scoped, tag = 'output window, operand 0']
    %11 = vsyncpa [#allocation4], 0
    %12 = vsyncpa [#allocation7], 0
    %13 = vsyncpa [#allocation5], 0
    %s14 = scalar_lea.sflag [#allocation5], 1
    %15 = vsyncpa %s14, 0
    loop: start=0, step=1, limit=4
    $region2: #{tpu_custom_call.1} parent=1 // loop_pre_header
      _
    $region3: #{tpu_custom_call.1} parent=1 // loop_header
      %s17 = sphi 0, %s21
      %p18 = scmp.ge.s32.totalorder %s17, 4
      %s27 = sphi 0, %s29
      %s30 = sphi 0, %s27
      %s31 = sphi 0, %s30
      %s47 = sphi 0, %s31
      %s53 = sphi 0, %s55
      %s56 = sphi 0, %s53
      %s57 = sphi 0, %s56
      %s73 = sphi 0, %s57
      %s77 = sphi 0, %s77
      %s79 = sphi 0, %s77
      %s80 = sphi 0, %s79
      %s94 = sphi 0, %s80
      %s98 = sphi 0, %s98
      %s100 = sphi 0, %s98
      %s101 = sphi 0, %s100
      %s115 = sphi 0, %s101
      %s119 = sphi 0, %s119
      %s121 = sphi 0, %s119
      %s122 = sphi 0, %s121
      %s136 = sphi 0, %s122
      %s140 = sphi 0, %s140
      %s142 = sphi 0, %s140
      %s143 = sphi 0, %s142
      %s157 = sphi 0, %s143
      %s163 = sphi 0, %s165
      %s166 = sphi 0, %s163
      %s167 = sphi 0, %s166
      %s183 = sphi 0, %s167
    $region4: #{tpu_custom_call.1} parent=1 // loop_header_branch
      %20 = sbr.rel (%p18) target = $region8
    $region5: #{tpu_custom_call.1} parent=1 // loop_body
      %s22 = ssub.s32 %s17, 1
      %s23 = ssub.s32 %s17, 2
      %s24 = sadd.s32 %s17, 1
      %s25 = ssub.s32 %s17, %s24
      %p26 = scmp.eq.s32.totalorder %s25, 0
      %s28 = sadd.s32 %s27, 1
      %s29 = scalar_select %p26, %s27, %s28
      %p32 = pneg %p26
      %p33 = scmp.eq.s32.totalorder %s17, 1
      %p34 = por %p32, %p33
      %p35 = scmp.ne.s32.totalorder %s27, %s30
      %p36 = scmp.eq.s32.totalorder %s17, 0
      %p37 = por %p35, %p36
      %p38 = scmp.ne.s32.totalorder %s27, %s30
      %p39 = scmp.eq.s32.totalorder %s22, 1
      %p40 = por %p38, %p39
      %p41 = scmp.ne.s32.totalorder %s30, %s31
      %p42 = scmp.eq.s32.totalorder %s22, 0
      %p43 = por %p41, %p42
      %p44 = scmp.ne.s32.totalorder %s30, %s31
      %p45 = scmp.eq.s32.totalorder %s23, 1
      %p46 = por %p44, %p45
      %p48 = scmp.ne.s32.totalorder %s31, %s47
      %p49 = scmp.eq.s32.totalorder %s23, 0
      %p50 = por %p48, %p49
      %s51 = ssub.s32 %s17, %s24
      %p52 = scmp.eq.s32.totalorder %s51, 0
      %s54 = sadd.s32 %s53, 1
      %s55 = scalar_select %p52, %s53, %s54
      %p58 = pneg %p52
      %p59 = scmp.eq.s32.totalorder %s17, 1
      %p60 = por %p58, %p59
      %p61 = scmp.ne.s32.totalorder %s53, %s56
      %p62 = scmp.eq.s32.totalorder %s17, 0
      %p63 = por %p61, %p62
      %p64 = scmp.ne.s32.totalorder %s53, %s56
      %p65 = scmp.eq.s32.totalorder %s22, 1
      %p66 = por %p64, %p65
      %p67 = scmp.ne.s32.totalorder %s56, %s57
      %p68 = scmp.eq.s32.totalorder %s22, 0
      %p69 = por %p67, %p68
      %p70 = scmp.ne.s32.totalorder %s56, %s57
      %p71 = scmp.eq.s32.totalorder %s23, 1
      %p72 = por %p70, %p71
      %p74 = scmp.ne.s32.totalorder %s57, %s73
      %p75 = scmp.eq.s32.totalorder %s23, 0
      %p76 = por %p74, %p75
      %s78 = sadd.s32 %s77, 1
      %p81 = scmp.eq.s32.totalorder %s17, 1
      %p82 = scmp.ne.s32.totalorder %s77, %s79
      %p83 = scmp.eq.s32.totalorder %s17, 0
      %p84 = por %p82, %p83
      %p85 = scmp.ne.s32.totalorder %s77, %s79
      %p86 = scmp.eq.s32.totalorder %s22, 1
      %p87 = por %p85, %p86
      %p88 = scmp.ne.s32.totalorder %s79, %s80
      %p89 = scmp.eq.s32.totalorder %s22, 0
      %p90 = por %p88, %p89
      %p91 = scmp.ne.s32.totalorder %s79, %s80
      %p92 = scmp.eq.s32.totalorder %s23, 1
      %p93 = por %p91, %p92
      %p95 = scmp.ne.s32.totalorder %s80, %s94
      %p96 = scmp.eq.s32.totalorder %s23, 0
      %p97 = por %p95, %p96
      %s99 = sadd.s32 %s98, 1
      %p102 = scmp.eq.s32.totalorder %s17, 1
      %p103 = scmp.ne.s32.totalorder %s98, %s100
      %p104 = scmp.eq.s32.totalorder %s17, 0
      %p105 = por %p103, %p104
      %p106 = scmp.ne.s32.totalorder %s98, %s100
      %p107 = scmp.eq.s32.totalorder %s22, 1
      %p108 = por %p106, %p107
      %p109 = scmp.ne.s32.totalorder %s100, %s101
      %p110 = scmp.eq.s32.totalorder %s22, 0
      %p111 = por %p109, %p110
      %p112 = scmp.ne.s32.totalorder %s100, %s101
      %p113 = scmp.eq.s32.totalorder %s23, 1
      %p114 = por %p112, %p113
      %p116 = scmp.ne.s32.totalorder %s101, %s115
      %p117 = scmp.eq.s32.totalorder %s23, 0
      %p118 = por %p116, %p117
      %s120 = sadd.s32 %s119, 1
      %p123 = scmp.eq.s32.totalorder %s17, 1
      %p124 = scmp.ne.s32.totalorder %s119, %s121
      %p125 = scmp.eq.s32.totalorder %s17, 0
      %p126 = por %p124, %p125
      %p127 = scmp.ne.s32.totalorder %s119, %s121
      %p128 = scmp.eq.s32.totalorder %s22, 1
      %p129 = por %p127, %p128
      %p130 = scmp.ne.s32.totalorder %s121, %s122
      %p131 = scmp.eq.s32.totalorder %s22, 0
      %p132 = por %p130, %p131
      %p133 = scmp.ne.s32.totalorder %s121, %s122
      %p134 = scmp.eq.s32.totalorder %s23, 1
      %p135 = por %p133, %p134
      %p137 = scmp.ne.s32.totalorder %s122, %s136
      %p138 = scmp.eq.s32.totalorder %s23, 0
      %p139 = por %p137, %p138
      %s141 = sadd.s32 %s140, 1
      %p144 = scmp.eq.s32.totalorder %s17, 1
      %p145 = scmp.ne.s32.totalorder %s140, %s142
      %p146 = scmp.eq.s32.totalorder %s17, 0
      %p147 = por %p145, %p146
      %p148 = scmp.ne.s32.totalorder %s140, %s142
      %p149 = scmp.eq.s32.totalorder %s22, 1
      %p150 = por %p148, %p149
      %p151 = scmp.ne.s32.totalorder %s142, %s143
      %p152 = scmp.eq.s32.totalorder %s22, 0
      %p153 = por %p151, %p152
      %p154 = scmp.ne.s32.totalorder %s142, %s143
      %p155 = scmp.eq.s32.totalorder %s23, 1
      %p156 = por %p154, %p155
      %p158 = scmp.ne.s32.totalorder %s143, %s157
      %p159 = scmp.eq.s32.totalorder %s23, 0
      %p160 = por %p158, %p159
      %s161 = ssub.s32 %s17, %s24
      %p162 = scmp.eq.s32.totalorder %s161, 0
      %s164 = sadd.s32 %s163, 1
      %s165 = scalar_select %p162, %s163, %s164
      %p168 = pneg %p162
      %p169 = scmp.eq.s32.totalorder %s17, 1
      %p170 = por %p168, %p169
      %p171 = scmp.ne.s32.totalorder %s163, %s166
      %p172 = scmp.eq.s32.totalorder %s17, 0
      %p173 = por %p171, %p172
      %p174 = scmp.ne.s32.totalorder %s163, %s166
      %p175 = scmp.eq.s32.totalorder %s22, 1
      %p176 = por %p174, %p175
      %p177 = scmp.ne.s32.totalorder %s166, %s167
      %p178 = scmp.eq.s32.totalorder %s22, 0
      %p179 = por %p177, %p178
      %p180 = scmp.ne.s32.totalorder %s166, %s167
      %p181 = scmp.eq.s32.totalorder %s23, 1
      %p182 = por %p180, %p181
      %p184 = scmp.ne.s32.totalorder %s167, %s183
      %p185 = scmp.eq.s32.totalorder %s23, 0
      %p186 = por %p184, %p185
      %p187 = scmp.le.s32.totalorder 1, %s17
      %p188 = scmp.lt.s32.totalorder %s17, 3
      %p189 = pnand %p187, %p188
      %p190 = pneg %p189
      // Predicated region
      $region9: #{tpu_custom_call.1} parent=5 // pred_check
        _
      $region10: #{tpu_custom_call.1} parent=5 // pred_check_branch
        %192 = sbr.rel (%p189) target = $region12
      $region11: #{tpu_custom_call.1} parent=5 // pred_region
        %s193 = ssub.s32 %s17, 1
        // Predicated region
        $region13: #{tpu_custom_call.1} parent=11 // pred_check
          %p194 = pneg %p90
        $region14: #{tpu_custom_call.1} parent=11 // pred_check_branch
          %196 = sbr.rel (%p194) target = $region16
        $region15: #{tpu_custom_call.1} parent=11 // pred_region
          %198 = vsyncadd [#allocation4], 0
          %s200 = sshll.u32 %s2, 4
          %s201 = int_to_ptr.hbm [resolvable:$true] %s200
          %s202 = sshll.u32 [#allocation3], 4
          %s203 = int_to_ptr.vmem [resolvable:$true] %s202
          %205 = dma.hbm_to_vmem [thread:$0]  %s201, 64, %s203, [#allocation4]
        $region16: #{tpu_custom_call.1} parent=11 // pred_fallthru
          _
        // Predicated region
        $region17: #{tpu_custom_call.1} parent=11 // pred_check
          %p206 = pneg %p111
        $region18: #{tpu_custom_call.1} parent=11 // pred_check_branch
          %208 = sbr.rel (%p206) target = $region20
        $region19: #{tpu_custom_call.1} parent=11 // pred_region
          %210 = vsyncadd [#allocation7], 0
          %s211 = sshll.u32 %s3, 4
          %s212 = int_to_ptr.hbm [resolvable:$true] %s211
          %s213 = sshll.u32 [#allocation6], 4
          %s214 = int_to_ptr.vmem [resolvable:$true] %s213
          %219 = dma.hbm_to_vmem [thread:$0]  %s212, 256, %s214, [#allocation7], 128, 128, 8
        $region20: #{tpu_custom_call.1} parent=11 // pred_fallthru
          _
        // Predicated region
        $region21: #{tpu_custom_call.1} parent=11 // pred_check
          %p220 = pneg %p132
        $region22: #{tpu_custom_call.1} parent=11 // pred_check_branch
          %222 = sbr.rel (%p220) target = $region24
        $region23: #{tpu_custom_call.1} parent=11 // pred_region
          _
        $region24: #{tpu_custom_call.1} parent=11 // pred_fallthru
          _
        // Predicated region
        $region25: #{tpu_custom_call.1} parent=11 // pred_check
          %p223 = pneg %p153
        $region26: #{tpu_custom_call.1} parent=11 // pred_check_branch
          %225 = sbr.rel (%p223) target = $region28
        $region27: #{tpu_custom_call.1} parent=11 // pred_region
          %227 = vsyncadd [#allocation7], 0
          %s228 = sshll.u32 %s5, 4
          %s229 = int_to_ptr.hbm [resolvable:$true] %s228
          %s230 = sshll.u32 [#allocation8], 4
          %s231 = int_to_ptr.vmem [resolvable:$true] %s230
          %236 = dma.hbm_to_vmem [thread:$0]  %s229, 256, %s231, [#allocation7], 128, 128, 8
        $region28: #{tpu_custom_call.1} parent=11 // pred_fallthru
          _
      $region12: #{tpu_custom_call.1} parent=5 // pred_fallthru
        _
      %p237 = scmp.lt.s32.totalorder %s17, 2
      // Predicated region
      $region29: #{tpu_custom_call.1} parent=5 // pred_check
        %p238 = pneg %p237
      $region30: #{tpu_custom_call.1} parent=5 // pred_check_branch
        %240 = sbr.rel (%p238) target = $region32
      $region31: #{tpu_custom_call.1} parent=5 // pred_region
        // Predicated region
        $region33: #{tpu_custom_call.1} parent=31 // pred_check
          %p241 = pneg %p37
        $region34: #{tpu_custom_call.1} parent=31 // pred_check_branch
          %243 = sbr.rel (%p241) target = $region36
        $region35: #{tpu_custom_call.1} parent=31 // pred_region
          %p244 = scmp.lt.s32.totalorder %s17, 1
          %s245 = scalar_select %p244, %s17, 1
          %s246 = smul.addr %s245, 2
          %s247 = smul.addr %s246, 4
          %s248 = scalar_lea.vmem %s0, %s247
        $region36: #{tpu_custom_call.1} parent=31 // pred_fallthru
          _
        // Predicated region
        $region37: #{tpu_custom_call.1} parent=31 // pred_check
          %p249 = pneg %p63
        $region38: #{tpu_custom_call.1} parent=31 // pred_check_branch
          %251 = sbr.rel (%p249) target = $region40
        $region39: #{tpu_custom_call.1} parent=31 // pred_region
          %p252 = scmp.lt.s32.totalorder %s17, 1
          %s253 = scalar_select %p252, %s17, 1
          %s254 = smul.addr %s253, 2
          %s255 = scalar_lea.vmem %s1, %s254
        $region40: #{tpu_custom_call.1} parent=31 // pred_fallthru
          _
      $region32: #{tpu_custom_call.1} parent=5 // pred_fallthru
        _
      %p256 = scmp.le.s32.totalorder 1, %s17
      %p257 = scmp.lt.s32.totalorder %s17, 3
      %p258 = pnand %p256, %p257
      %p259 = pneg %p258
      // Predicated region
      $region41: #{tpu_custom_call.1} parent=5 // pred_check
        _
      $region42: #{tpu_custom_call.1} parent=5 // pred_check_branch
        %261 = sbr.rel (%p258) target = $region44
      $region43: #{tpu_custom_call.1} parent=5 // pred_region
        %s262 = ssub.s32 %s17, 1
        // Predicated region
        $region45: #{tpu_custom_call.1} parent=43 // pred_check
          %p263 = pneg %p90
        $region46: #{tpu_custom_call.1} parent=43 // pred_check_branch
          %265 = sbr.rel (%p263) target = $region48
        $region47: #{tpu_custom_call.1} parent=43 // pred_region
          %267 = dma.done [#allocation4], 64
        $region48: #{tpu_custom_call.1} parent=43 // pred_fallthru
          _
        // Predicated region
        $region49: #{tpu_custom_call.1} parent=43 // pred_check
          %p268 = pneg %p111
        $region50: #{tpu_custom_call.1} parent=43 // pred_check_branch
          %270 = sbr.rel (%p268) target = $region52
        $region51: #{tpu_custom_call.1} parent=43 // pred_region
          %272 = dma.done [#allocation7], 256
        $region52: #{tpu_custom_call.1} parent=43 // pred_fallthru
          _
        // Predicated region
        $region53: #{tpu_custom_call.1} parent=43 // pred_check
          %p273 = pneg %p153
        $region54: #{tpu_custom_call.1} parent=43 // pred_check_branch
          %275 = sbr.rel (%p273) target = $region56
        $region55: #{tpu_custom_call.1} parent=43 // pred_region
          %277 = dma.done [#allocation7], 256
        $region56: #{tpu_custom_call.1} parent=43 // pred_fallthru
          _
        %p278 = scmp.lt.s32.totalorder %s22, 1
        %s279 = scalar_select %p278, %s22, 1
        %s280 = smul.addr %s279, 2
        %s281 = smul.addr %s280, 4
        %s282 = scalar_lea.vmem %s0, %s281
        %p283 = pneg %p43
        %p284 = pneg %p40
        %p285 = scmp.lt.s32.totalorder %s22, 1
        %s286 = scalar_select %p285, %s22, 1
        %s287 = smul.addr %s286, 2
        %s288 = scalar_lea.vmem %s1, %s287
        %p289 = pneg %p69
        %p290 = pneg %p66
        %p291 = pneg %p90
        %p292 = pneg %p87
        %p293 = pneg %p111
        %p294 = pneg %p108
        %p295 = pneg %p132
        %p296 = pneg %p129
        %p297 = pneg %p153
        %p298 = pneg %p150
        %p299 = pneg %p179
        %p300 = pneg %p176
        %s301 = sand.u32 %s166, 1
        %s302 = scalar_lea.sflag [#allocation5], %s301
        %s303 = sand.u32 %s166, 1
        %s304 = smul.addr %s303, 32
        %s305 = scalar_lea.vmem [#allocation9], %s304
        %p306 = scmp.lt.s32.totalorder %s22, 1
        %s307 = scalar_select %p306, %s22, 1
        %s308 = smul.addr %s307, 2
        %s309 = smul.addr %s308, 4
        %s310 = scalar_lea.vmem %s0, %s309
        %p311 = scmp.lt.s32.totalorder %s22, 1
        %s312 = scalar_select %p311, %s22, 1
        %s313 = smul.addr %s312, 2
        %s314 = scalar_lea.vmem %s1, %s313
        %v315 = vld [vmem:[%s314] sm:$0x3]
        %v316 = vld [vmem:[%s310] sm:$0xff]
        %v318 = vperm.slane %v315, 0
        %v319 = vperm.slane %v315, 1
        %v320 = vrot.slane %v319, 4
        %vm321 = vcmask 1043456
        %v322 = vsel %vm321, %v318, %v320
        %v324 = vmul.f32 %v316, %v322
        %v325 = vld [vmem:[#allocation3] ss:$2 sm:$0x3]
        %v327 = vperm.slane %v325, 0
        %v328 = vperm.slane %v325, 1
        %v329 = vrot.slane %v328, 4
        %v330 = vsel %vm321, %v327, %v329
        %v332 = vmul.f32 %v324, %v330
        %s333 = scalar_lea.vmem [#allocation3], 1
        %v334 = vld [vmem:[%s333] ss:$2 sm:$0x3]
        %v336 = vperm.slane %v334, 0
        %v337 = vperm.slane %v334, 1
        %v338 = vrot.slane %v337, 4
        %v339 = vsel %vm321, %v336, %v338
        %v341 = vmul.f32 %v324, %v339
        %343 = vst [vmem:[#allocation1] ss:$2 sm:$0xff] %v332
        %v344 = vld.sshfl [vmem:[#allocation1] sm:$0xff pattern:$0x75316420]
        %v345 = vld.sshfl [vmem:[#allocation1 + $0x8] sm:$0xff pattern:$0x75316420]
        %346 = vrot.lane.b32.xlu0 %v344, 17
        %v347 = vpop.permute.xlu0 %346
        %348 = vrot.lane.b32.xlu0 %v345, 17
        %v349 = vpop.permute.xlu0 %348
        %vm350 = vcmask 138240
        %v351 = vsel %vm350, %v347, %v349
        %vm354 = vcmask 1043592
        %355 = vst.msk [vmem:[#allocation2] sm:$0xf] %vm354, %v347
        %356 = vst [vmem:[#allocation2 + $0x8] sm:$0xf] %v351
        %vm357 = vcmask 134144
        %358 = vst.msk [vmem:[#allocation2] sm:$0xf] %vm357, 0.0
        %s360 = scalar_lea.vmem [#allocation1], 1
        %361 = vst [vmem:[%s360] ss:$2 sm:$0xff] %v324
        %v362 = vld.sshfl [vmem:[#allocation1] sm:$0xff pattern:$0x75316420]
        %v363 = vld.sshfl [vmem:[#allocation1 + $0x8] sm:$0xff pattern:$0x75316420]
        %364 = vrot.lane.b32.xlu0 %v362, 16
        %v365 = vpop.permute.xlu0 %364
        %366 = vrot.lane.b32.xlu0 %v363, 16
        %v367 = vpop.permute.xlu0 %366
        %vm368 = vcmask 130048
        %v369 = vsel %vm368, %v365, %v367
        %vm372 = vcmask 1047684
        %373 = vst.msk [vmem:[#allocation2] sm:$0xf0] %vm372, %v365
        %374 = vst [vmem:[#allocation2 + $0x8] sm:$0xf0] %v369
        %vm375 = vcmask 130052
        %376 = vst.msk [vmem:[#allocation2] sm:$0xf0] %vm375, 0.0
        %378 = vst [vmem:[#allocation1] ss:$2 sm:$0xff] %v341
        %v379 = vld.sshfl [vmem:[#allocation1] sm:$0xff pattern:$0x75316420]
        %v380 = vld.sshfl [vmem:[#allocation1 + $0x8] sm:$0xff pattern:$0x75316420]
        %381 = vrot.lane.b32.xlu0 %v379, 15
        %v382 = vpop.permute.xlu0 %381
        %383 = vrot.lane.b32.xlu0 %v380, 15
        %v384 = vpop.permute.xlu0 %383
        %vm385 = vcmask 121856
        %v386 = vsel %vm385, %v382, %v384
        %vm389 = vcmask 1043576
        %390 = vst.msk [vmem:[#allocation2 + $0x10] sm:$0xf] %vm389, %v382
        %391 = vst [vmem:[#allocation2 + $0x18] sm:$0xf] %v386
        %vm392 = vcmask 117760
        %393 = vst.msk [vmem:[#allocation2 + $0x10] sm:$0xf] %vm392, 0.0
        %s394 = scalar_lea.vmem [#allocation1], 1
        %395 = vst [vmem:[%s394] ss:$2 sm:$0xff] %v332
        %v396 = vld.sshfl [vmem:[#allocation1] sm:$0xff pattern:$0x75316420]
        %v397 = vld.sshfl [vmem:[#allocation1 + $0x8] sm:$0xff pattern:$0x75316420]
        %398 = vrot.lane.b32.xlu0 %v396, 1
        %v399 = vpop.permute.xlu0 %398
        %400 = vrot.lane.b32.xlu0 %v397, 1
        %v401 = vpop.permute.xlu0 %400
        %vm402 = vcmask 7168
        %v403 = vsel %vm402, %v399, %v401
        %vm406 = vcmask 1047564
        %407 = vst.msk [vmem:[#allocation2 + $0x10] sm:$0xf0] %vm406, %v399
        %408 = vst [vmem:[#allocation2 + $0x18] sm:$0xf0] %v403
        %vm409 = vcmask 7172
        %410 = vst.msk [vmem:[#allocation2 + $0x10] sm:$0xf0] %vm409, 0.0
        %411 = vst [vmem:[#allocation1] ss:$2 sm:$0xff] %v324
        %v412 = vld.sshfl [vmem:[#allocation1] sm:$0xff pattern:$0x75316420]
        %v413 = vld.sshfl [vmem:[#allocation1 + $0x8] sm:$0xff pattern:$0x75316420]
        %416 = vst [vmem:[#allocation2 + $0x20] sm:$0xf] %v412
        %417 = vst [vmem:[#allocation2 + $0x28] sm:$0xf] %v413
        %s418 = scalar_lea.vmem [#allocation1], 1
        %419 = vst [vmem:[%s418] ss:$2 sm:$0xff] %v341
        %v420 = vld.sshfl [vmem:[#allocation1] sm:$0xff pattern:$0x75316420]
        %v421 = vld.sshfl [vmem:[#allocation1 + $0x8] sm:$0xff pattern:$0x75316420]
        %422 = vrot.lane.b32.xlu0 %v420, 127
        %v423 = vpop.permute.xlu0 %422
        %424 = vrot.lane.b32.xlu0 %v421, 127
        %v425 = vpop.permute.xlu0 %424
        %vm426 = vcmask 1039360
        %v427 = vsel %vm426, %v423, %v425
        %430 = vst [vmem:[#allocation2 + $0x20] sm:$0xf0] %v427
        %vm431 = vcmask 1039364
        %432 = vst.msk [vmem:[#allocation2 + $0x28] sm:$0xf0] %vm431, %v425
        %vm433 = vcmask 1048572
        %434 = vst.msk [vmem:[#allocation2 + $0x28] sm:$0xf0] %vm433, 0.0
        %435 = vst [vmem:[#allocation1] ss:$2 sm:$0xff] %v332
        %v436 = vld.sshfl [vmem:[#allocation1] sm:$0xff pattern:$0x75316420]
        %v437 = vld.sshfl [vmem:[#allocation1 + $0x8] sm:$0xff pattern:$0x75316420]
        %438 = vrot.lane.b32.xlu0 %v436, 113
        %v439 = vpop.permute.xlu0 %438
        %440 = vrot.lane.b32.xlu0 %v437, 113
        %v441 = vpop.permute.xlu0 %440
        %vm442 = vcmask 924672
        %v443 = vsel %vm442, %v439, %v441
        %446 = vst [vmem:[#allocation2 + $0x30] sm:$0xf] %v443
        %vm447 = vcmask 920576
        %448 = vst.msk [vmem:[#allocation2 + $0x38] sm:$0xf] %vm447, %v441
        %vm449 = vcmask 1044360
        %450 = vst.msk [vmem:[#allocation2 + $0x38] sm:$0xf] %vm449, 0.0
        %s451 = scalar_lea.vmem [#allocation1], 1
        %452 = vst [vmem:[%s451] ss:$2 sm:$0xff] %v324
        %v453 = vld.sshfl [vmem:[#allocation1] sm:$0xff pattern:$0x75316420]
        %v454 = vld.sshfl [vmem:[#allocation1 + $0x8] sm:$0xff pattern:$0x75316420]
        %455 = vrot.lane.b32.xlu0 %v453, 112
        %v456 = vpop.permute.xlu0 %455
        %457 = vrot.lane.b32.xlu0 %v454, 112
        %v458 = vpop.permute.xlu0 %457
        %vm459 = vcmask 916480
        %v460 = vsel %vm459, %v456, %v458
        %463 = vst [vmem:[#allocation2 + $0x30] sm:$0xf0] %v460
        %vm464 = vcmask 916484
        %465 = vst.msk [vmem:[#allocation2 + $0x38] sm:$0xf0] %vm464, %v458
        %vm466 = vcmask 1048452
        %467 = vst.msk [vmem:[#allocation2 + $0x38] sm:$0xf0] %vm466, 0.0
        %468 = vst [vmem:[#allocation1] ss:$2 sm:$0xff] %v341
        %v469 = vld.sshfl [vmem:[#allocation1] sm:$0xff pattern:$0x75316420]
        %v470 = vld.sshfl [vmem:[#allocation1 + $0x8] sm:$0xff pattern:$0x75316420]
        %471 = vrot.lane.b32.xlu0 %v469, 111
        %v472 = vpop.permute.xlu0 %471
        %473 = vrot.lane.b32.xlu0 %v470, 111
        %v474 = vpop.permute.xlu0 %473
        %vm475 = vcmask 908288
        %v476 = vsel %vm475, %v472, %v474
        %479 = vst [vmem:[#allocation2 + $0x40] sm:$0xf] %v476
        %vm480 = vcmask 904192
        %481 = vst.msk [vmem:[#allocation2 + $0x48] sm:$0xf] %vm480, %v474
        %vm482 = vcmask 1044344
        %483 = vst.msk [vmem:[#allocation2 + $0x48] sm:$0xf] %vm482, 0.0
        %v484 = vld [vmem:[#allocation6] sm:$0xff]
        %v485 = vld [vmem:[#allocation6 + $0x8] sm:$0xff]
        %v486 = vld [vmem:[#allocation2] sm:$0xff]
        %v487 = vld [vmem:[#allocation2 + $0x8] sm:$0xff]
        %v488 = vld [vmem:[#allocation2 + $0x10] sm:$0xff]
        %v489 = vld [vmem:[#allocation2 + $0x18] sm:$0xff]
        %v490 = vld [vmem:[#allocation2 + $0x20] sm:$0xff]
        %v491 = vld [vmem:[#allocation2 + $0x28] sm:$0xff]
        %v492 = vld [vmem:[#allocation2 + $0x30] sm:$0xff]
        %v493 = vld [vmem:[#allocation2 + $0x38] sm:$0xff]
        %v494 = vld [vmem:[#allocation2 + $0x40] sm:$0xf]
        %v495 = vld [vmem:[#allocation2 + $0x48] sm:$0xf]
        %vm496 = vcmask 293888
        %v498 = vsel %vm496, %v484, 0
        %v501 = vsel %vm496, %v485, 0
        %v504 = vsel %vm321, %v494, 0
        %v507 = vsel %vm321, %v495, 0
        %509 = vmatpush.msra.mxu0 0.0
        %510 = vmatpush.msra.mxu0 0.0
        %511 = vmatpush.msra.mxu0 0.0
        %512 = vmatpush.msra.mxu0 0.0
        %513 = vmatpush.msra.mxu0 0.0
        %514 = vmatpush.msra.mxu0 0.0
        %515 = vmatpush.msra.mxu0 0.0
        %516 = vmatpush.msra.mxu0 0.0
        %517 = vmatpush.msra.mxu0 0.0
        %518 = vmatpush.msra.mxu0 0.0
        %519 = vmatpush.msra.mxu0 0.0
        %520 = vmatpush.msra.mxu0 %v504
        %521 = vmatpush.msra.mxu0 %v492
        %522 = vmatpush.msra.mxu0 %v490
        %523 = vmatpush.msra.mxu0 %v488
        %524 = vmatpush.msra.mxu0 %v486
        %525 = vmatmul.f32.gmra.mxu0 %v498
        %v526 = vpop.f32.mrf.mxu0
        %v527 = vadd.f32 0.0, %v526
        %528 = vmatmul.f32.gmra.mxu0 %v501
        %v529 = vpop.f32.mrf.mxu0
        %v530 = vadd.f32 0.0, %v529
        %531 = vdwg.mxu0
        %532 = vmatpush.msra.mxu0 0.0
        %533 = vmatpush.msra.mxu0 0.0
        %534 = vmatpush.msra.mxu0 0.0
        %535 = vmatpush.msra.mxu0 0.0
        %536 = vmatpush.msra.mxu0 0.0
        %537 = vmatpush.msra.mxu0 0.0
        %538 = vmatpush.msra.mxu0 0.0
        %539 = vmatpush.msra.mxu0 0.0
        %540 = vmatpush.msra.mxu0 0.0
        %541 = vmatpush.msra.mxu0 0.0
        %542 = vmatpush.msra.mxu0 0.0
        %543 = vmatpush.msra.mxu0 %v507
        %544 = vmatpush.msra.mxu0 %v493
        %545 = vmatpush.msra.mxu0 %v491
        %546 = vmatpush.msra.mxu0 %v489
        %547 = vmatpush.msra.mxu0 %v487
        %548 = vmatmul.f32.gmra.mxu0 %v498
        %v549 = vpop.f32.mrf.mxu0
        %v550 = vadd.f32 0.0, %v549
        %551 = vmatmul.f32.gmra.mxu0 %v501
        %v552 = vpop.f32.mrf.mxu0
        %v553 = vadd.f32 0.0, %v552
        %554 = vdwg.mxu0
        %v555 = vld [vmem:[%s4] sm:$0xff]
        %v556 = vld [vmem:[%s4 + $0x8] sm:$0xff]
        %v557 = vadd.f32 %v527, %v550
        %558 = vadd.xlane.f32.xlu0 %v557
        %v559 = vpop.xlane.xlu0 %558
        %v560 = vadd.f32 %v530, %v553
        %561 = vadd.xlane.f32.xlu0 %v560
        %v562 = vpop.xlane.xlu0 %561
        %v563 = vmul.f32 %v527, %v527
        %v564 = vmul.f32 %v550, %v550
        %v565 = vmul.f32 %v530, %v530
        %v566 = vmul.f32 %v553, %v553
        %v567 = vadd.f32 %v563, %v564
        %568 = vadd.xlane.f32.xlu0 %v567
        %v569 = vpop.xlane.xlu0 %568
        %v570 = vadd.f32 %v565, %v566
        %571 = vadd.xlane.f32.xlu0 %v570
        %v572 = vpop.xlane.xlu0 %571
        %v573 = vmul.f32 %v555, 256.0
        %v574 = vmul.f32 %v556, 256.0
        %v575 = vadd.f32 %v559, %v573
        %v576 = vadd.f32 %v562, %v574
        %v577 = vmul.f32 %v555, 2.0
        %v578 = vmul.f32 %v556, 2.0
        %v579 = vmul.f32 %v577, %v559
        %v580 = vmul.f32 %v578, %v562
        %v581 = vadd.f32 %v569, %v579
        %v582 = vadd.f32 %v572, %v580
        %v583 = vmul.f32 %v573, %v555
        %v584 = vmul.f32 %v574, %v556
        %v585 = vadd.f32 %v581, %v583
        %v586 = vadd.f32 %v582, %v584
        %v587 = vld [vmem:[#allocation8] sm:$0xff]
        %v588 = vld [vmem:[#allocation8 + $0x8] sm:$0xff]
        %v590 = vsel %vm368, %v587, 0
        %v593 = vsel %vm368, %v588, 0
        %595 = vmatpush.msra.mxu0 0.0
        %596 = vmatpush.msra.mxu0 0.0
        %597 = vmatpush.msra.mxu0 0.0
        %598 = vmatpush.msra.mxu0 0.0
        %599 = vmatpush.msra.mxu0 0.0
        %600 = vmatpush.msra.mxu0 0.0
        %601 = vmatpush.msra.mxu0 0.0
        %602 = vmatpush.msra.mxu0 0.0
        %603 = vmatpush.msra.mxu0 0.0
        %604 = vmatpush.msra.mxu0 0.0
        %605 = vmatpush.msra.mxu0 0.0
        %606 = vmatpush.msra.mxu0 0.0
        %607 = vmatpush.msra.mxu0 0.0
        %608 = vmatpush.msra.mxu0 0.0
        %609 = vmatpush.msra.mxu0 %v576
        %610 = vmatpush.msra.mxu0 %v575
        %611 = vmatmul.f32.gmra.mxu0 %v590
        %v612 = vpop.f32.mrf.mxu0
        %v613 = vadd.f32 0.0, %v612
        %614 = vmatmul.f32.gmra.mxu0 %v593
        %v615 = vpop.f32.mrf.mxu0
        %v616 = vadd.f32 0.0, %v615
        %617 = vdwg.mxu0
        %618 = vmatpush.msra.mxu0 0.0
        %619 = vmatpush.msra.mxu0 0.0
        %620 = vmatpush.msra.mxu0 0.0
        %621 = vmatpush.msra.mxu0 0.0
        %622 = vmatpush.msra.mxu0 0.0
        %623 = vmatpush.msra.mxu0 0.0
        %624 = vmatpush.msra.mxu0 0.0
        %625 = vmatpush.msra.mxu0 0.0
        %626 = vmatpush.msra.mxu0 0.0
        %627 = vmatpush.msra.mxu0 0.0
        %628 = vmatpush.msra.mxu0 0.0
        %629 = vmatpush.msra.mxu0 0.0
        %630 = vmatpush.msra.mxu0 0.0
        %631 = vmatpush.msra.mxu0 0.0
        %632 = vmatpush.msra.mxu0 %v586
        %633 = vmatpush.msra.mxu0 %v585
        %634 = vmatmul.f32.gmra.mxu0 %v590
        %v635 = vpop.f32.mrf.mxu0
        %v636 = vadd.f32 0.0, %v635
        %637 = vmatmul.f32.gmra.mxu0 %v593
        %v638 = vpop.f32.mrf.mxu0
        %v639 = vadd.f32 0.0, %v638
        %640 = vdwg.mxu0
        %v641 = vmul.f32 %v613, 0.001953125
        %v642 = vmul.f32 %v616, 0.001953125
        %v643 = vmul.f32 %v636, 0.001953125
        %v644 = vmul.f32 %v639, 0.001953125
        %v645 = vmul.f32 %v641, %v641
        %v646 = vmul.f32 %v642, %v642
        %v647 = vsub.f32 %v643, %v645
        %v648 = vsub.f32 %v644, %v646
        %v649 = vmax.f32 %v647, 0.0
        %v650 = vmax.f32 %v648, 0.0
        %v651 = vadd.f32 %v649, 1e-05
        %v652 = vadd.f32 %v650, 1e-05
        %v653 = vrsqrt.pop %v651
        %v654 = vmul.f32 %v653, %v651
        %v655 = vmul.f32 %v654, %v653
        %v656 = vmul.f32 0.5, %v655
        %v657 = vsub.f32 1.5, %v656
        %v658 = vmul.f32 %v653, %v657
        %vm659 = vweird.f32 %v651
        %vm660 = vweird.f32 %v653
        %vm661 = vmor %vm659, %vm660
        %v662 = vsel %vm661, %v653, %v658
        %v663 = vrsqrt.pop %v652
        %v664 = vmul.f32 %v663, %v652
        %v665 = vmul.f32 %v664, %v663
        %v666 = vmul.f32 0.5, %v665
        %v667 = vsub.f32 1.5, %v666
        %v668 = vmul.f32 %v663, %v667
        %vm669 = vweird.f32 %v652
        %vm670 = vweird.f32 %v663
        %vm671 = vmor %vm669, %vm670
        %v672 = vsel %vm671, %v663, %v668
        %675 = vrot.lane.b32.xlu0 %v662, 1
        %v676 = vpop.permute.xlu0 %675
        %677 = vrot.lane.b32.xlu0 %v672, 1
        %v678 = vpop.permute.xlu0 %677
        %v681 = vmul.f32 %v555, %v676
        %v682 = vmul.f32 %v556, %v678
        %v683 = vsub.f32 %v555, %v641
        %v684 = vsub.f32 %v556, %v642
        %687 = vrot.lane.b32.xlu0 %v681, 127
        %v688 = vpop.permute.xlu0 %687
        %689 = vrot.lane.b32.xlu0 %v682, 127
        %v690 = vpop.permute.xlu0 %689
        %v693 = vmul.f32 %v683, %v688
        %v694 = vmul.f32 %v684, %v690
        %697 = vrot.lane.b32.xlu0 %v555, 126
        %v698 = vpop.permute.xlu0 %697
        %699 = vrot.lane.b32.xlu0 %v556, 126
        %v700 = vpop.permute.xlu0 %699
        %v703 = vadd.f32 %v693, %v698
        %v704 = vadd.f32 %v694, %v700
        %705 = vset.pattern.permute.xlu0 1
        %706 = vperm.xlu0 %705, %v681
        %v707 = vpop.permute.xlu0 %706
        %709 = vset.pattern.permute.xlu0 1
        %710 = vperm.xlu0 %709, %v682
        %v711 = vpop.permute.xlu0 %710
        %v713 = vmul.f32 %v527, %v707
        %v714 = vmul.f32 %v550, %v707
        %v715 = vmul.f32 %v530, %v711
        %v716 = vmul.f32 %v553, %v711
        %718 = vset.pattern.permute.xlu0 0
        %719 = vperm.xlu0 %718, %v703
        %v720 = vpop.permute.xlu0 %719
        %723 = vset.pattern.permute.xlu0 0
        %724 = vperm.xlu0 %723, %v704
        %v725 = vpop.permute.xlu0 %724
        %v727 = vadd.f32 %v713, %v720
        %v728 = vadd.f32 %v714, %v720
        %v729 = vadd.f32 %v715, %v725
        %v730 = vadd.f32 %v716, %v725
        %v731 = vmin.f32 %v727, 25.0
        %v732 = vmin.f32 %v728, 25.0
        %v733 = vmin.f32 %v729, 25.0
        %v734 = vmin.f32 %v730, 25.0
        %v735 = vmul.f32 %v731, 1.442695
        %v736 = vpow.pop %v735
        %v737 = vmul.f32 %v732, 1.442695
        %v738 = vpow.pop %v737
        %v739 = vmul.f32 %v733, 1.442695
        %v740 = vpow.pop %v739
        %v741 = vmul.f32 %v734, 1.442695
        %v742 = vpow.pop %v741
        %v743 = vadd.f32 %v736, 2.0
        %v744 = vadd.f32 %v738, 2.0
        %v745 = vadd.f32 %v740, 2.0
        %v746 = vadd.f32 %v742, 2.0
        %v747 = vmul.f32 %v736, %v743
        %v748 = vmul.f32 %v738, %v744
        %v749 = vmul.f32 %v740, %v745
        %v750 = vmul.f32 %v742, %v746
        %v751 = vadd.f32 %v747, 2.0
        %v752 = vadd.f32 %v748, 2.0
        %v753 = vadd.f32 %v749, 2.0
        %v754 = vadd.f32 %v750, 2.0
        %v755 = vrcp.pop %v751
        %v756 = vmul.f32 %v751, %v755
        %v757 = vsub.f32 1.0, %v756
        %v758 = vmul.f32 %v755, %v757
        %v759 = vadd.f32 %v755, %v758
        %vm760 = vweird.f32 %v751
        %vm761 = vweird.f32 %v755
        %vm762 = vmor %vm760, %vm761
        %v763 = vsel %vm762, %v755, %v759
        %v764 = vand.u32 2147483647, %v751
        %vm765 = vcmp.eq.f32.partialorder %v764, 8.507059e+37
        %v766 = vand.u32 %v751, 2147483648
        %v767 = vor.u32 1.1754944e-38, %v766
        %v768 = vsel %vm765, %v767, %v763
        %v769 = vmul.f32 %v747, %v768
        %v770 = vrcp.pop %v752
        %v771 = vmul.f32 %v752, %v770
        %v772 = vsub.f32 1.0, %v771
        %v773 = vmul.f32 %v770, %v772
        %v774 = vadd.f32 %v770, %v773
        %vm775 = vweird.f32 %v752
        %vm776 = vweird.f32 %v770
        %vm777 = vmor %vm775, %vm776
        %v778 = vsel %vm777, %v770, %v774
        %v779 = vand.u32 2147483647, %v752
        %vm780 = vcmp.eq.f32.partialorder %v779, 8.507059e+37
        %v781 = vand.u32 %v752, 2147483648
        %v782 = vor.u32 1.1754944e-38, %v781
        %v783 = vsel %vm780, %v782, %v778
        %v784 = vmul.f32 %v748, %v783
        %v785 = vrcp.pop %v753
        %v786 = vmul.f32 %v753, %v785
        %v787 = vsub.f32 1.0, %v786
        %v788 = vmul.f32 %v785, %v787
        %v789 = vadd.f32 %v785, %v788
        %vm790 = vweird.f32 %v753
        %vm791 = vweird.f32 %v785
        %vm792 = vmor %vm790, %vm791
        %v793 = vsel %vm792, %v785, %v789
        %v794 = vand.u32 2147483647, %v753
        %vm795 = vcmp.eq.f32.partialorder %v794, 8.507059e+37
        %v796 = vand.u32 %v753, 2147483648
        %v797 = vor.u32 1.1754944e-38, %v796
        %v798 = vsel %vm795, %v797, %v793
        %v799 = vmul.f32 %v749, %v798
        %v800 = vrcp.pop %v754
        %v801 = vmul.f32 %v754, %v800
        %v802 = vsub.f32 1.0, %v801
        %v803 = vmul.f32 %v800, %v802
        %v804 = vadd.f32 %v800, %v803
        %vm805 = vweird.f32 %v754
        %vm806 = vweird.f32 %v800
        %vm807 = vmor %vm805, %vm806
        %v808 = vsel %vm807, %v800, %v804
        %v809 = vand.u32 2147483647, %v754
        %vm810 = vcmp.eq.f32.partialorder %v809, 8.507059e+37
        %v811 = vand.u32 %v754, 2147483648
        %v812 = vor.u32 1.1754944e-38, %v811
        %v813 = vsel %vm810, %v812, %v808
        %v814 = vmul.f32 %v750, %v813
        %v815 = vmul.f32 %v727, %v769
        %v816 = vmul.f32 %v728, %v784
        %v817 = vmul.f32 %v729, %v799
        %v818 = vmul.f32 %v730, %v814
        %v821 = vmul.f32 %v815, %v318
        %v822 = vmul.f32 %v816, %v319
        %v823 = vmul.f32 %v817, %v318
        %v824 = vmul.f32 %v818, %v319
        %825 = vst [vmem:[%s305] sm:$0xff] %v821
        %826 = vst [vmem:[%s305 + $0x8] sm:$0xff] %v822
        %827 = vst [vmem:[%s305 + $0x10] sm:$0xff] %v823
        %828 = vst [vmem:[%s305 + $0x18] sm:$0xff] %v824
        %s829 = sand.u32 %s166, 1
        %s830 = scalar_lea.sflag [#allocation5], %s829
        %s831 = sand.u32 %s166, 1
        %s832 = smul.addr %s831, 32
        %s833 = scalar_lea.vmem [#allocation9], %s832
        // Predicated region
        $region57: #{tpu_custom_call.1} parent=43 // pred_check
          %p834 = pneg %p176
        $region58: #{tpu_custom_call.1} parent=43 // pred_check_branch
          %836 = sbr.rel (%p834) target = $region60
        $region59: #{tpu_custom_call.1} parent=43 // pred_region
          %838 = vsyncadd %s830, 0
          %s839 = smul.addr %s22, 4
          %s840 = smul.addr %s839, 8
          %s841 = scalar_lea.hbm %s6, %s840
          %s842 = sshll.u32 %s833, 4
          %s843 = int_to_ptr.vmem [resolvable:$true] %s842
          %s844 = sshll.u32 %s841, 4
          %s845 = int_to_ptr.hbm [resolvable:$true] %s844
          %850 = dma.vmem_to_hbm [thread:$0]  %s843, 512, %s845, %s830, 256, 256, 16
        $region60: #{tpu_custom_call.1} parent=43 // pred_fallthru
          _
      $region44: #{tpu_custom_call.1} parent=5 // pred_fallthru
        _
      %p851 = scmp.le.s32.totalorder 2, %s17
      // Predicated region
      $region61: #{tpu_custom_call.1} parent=5 // pred_check
        %p852 = pneg %p851
      $region62: #{tpu_custom_call.1} parent=5 // pred_check_branch
        %854 = sbr.rel (%p852) target = $region64
      $region63: #{tpu_custom_call.1} parent=5 // pred_region
        %s855 = ssub.s32 %s17, 2
        // Predicated region
        $region65: #{tpu_custom_call.1} parent=63 // pred_check
          %p856 = pneg %p182
        $region66: #{tpu_custom_call.1} parent=63 // pred_check_branch
          %858 = sbr.rel (%p856) target = $region68
        $region67: #{tpu_custom_call.1} parent=63 // pred_region
          %s859 = sand.u32 %s167, 1
          %s860 = scalar_lea.sflag [#allocation5], %s859
          %s861 = sand.u32 %s167, 1
          %s862 = smul.addr %s861, 32
          %s863 = scalar_lea.vmem [#allocation9], %s862
          %865 = dma.done %s860, 512
        $region68: #{tpu_custom_call.1} parent=63 // pred_fallthru
          _
      $region64: #{tpu_custom_call.1} parent=5 // pred_fallthru
        _
    $region6: #{tpu_custom_call.1} parent=1 // loop_footer
      %s21 = sadd.s32 1, %s17
    $region7: #{tpu_custom_call.1} parent=1 // loop_footer_branch
      %16 = sbr.rel target = $region3
    $region8: #{tpu_custom_call.1} parent=1 // loop_exit
      _
    %866 = vsyncpa [#allocation4], 1
    %s867 = scalar_lea.sflag [#allocation4], 1
    %868 = vsyncpa %s867, 1
    %869 = vsyncpa [#allocation7], 1
    %870 = vsyncpa [#allocation5], 1
    %s871 = scalar_lea.sflag [#allocation5], 1
    %872 = vsyncpa %s871, 1

</llo_original>
